<compile_context>
chip_gen: v7x
topology: tpu7x:2x2x1
jax: 0.10.0
libtpu: 0.0.40
codegen_flags: <defaults>
</compile_context>

<pallas_src>
import functools
import math

import jax
import jax.numpy as jnp
from jax.experimental import pallas as pl
from jax.experimental.pallas import tpu as pltpu

LN_EPS = 1e-6                      # timm ViT LayerNorm eps
_NEG_INF = -1e30
_COMPUTE_DTYPE = jnp.bfloat16      # MXU input dtype; accumulation stays f32


def _gelu_tanh(x):
    c = math.sqrt(2.0 / math.pi)
    return 0.5 * x * (1.0 + jnp.tanh(c * (x + 0.044715 * x * x * x)))


def _layernorm(x, gamma, beta):
    mu = jnp.mean(x, axis=-1, keepdims=True)
    var = jnp.mean(jnp.square(x - mu), axis=-1, keepdims=True)
    return (x - mu) * jax.lax.rsqrt(var + LN_EPS) * gamma + beta


def _extract_patches(x, patch=16):
    """(B, C, H, W) -> (B, num_patches, C*patch*patch); im2col of the strided conv."""
    b, c, hh, ww = x.shape
    ph, pw = hh // patch, ww // patch
    x = x.reshape(b, c, ph, patch, pw, patch)
    x = x.transpose(0, 2, 4, 1, 3, 5)            # (B, ph, pw, C, p, p)
    return x.reshape(b, ph * pw, c * patch * patch)


# ---------------------------------------------------------------------------
# Kernel 1: patch embedding GEMM (+ fused bias), row-tiled.
#   bf16 patches x bf16 weight -> f32 accumulate.  Lane dims 768 / 384 are
#   fully dense; row blocks are multiples of 8 (padded in the wrapper).
# ---------------------------------------------------------------------------
def _patch_embed_kernel(p_ref, w_ref, b_ref, o_ref):
    y = jnp.dot(p_ref[...], w_ref[...], preferred_element_type=jnp.float32)
    o_ref[...] = (y + b_ref[...]).astype(o_ref.dtype)


def patch_embed(patches2d, w, b, *, row_block):
    rows, pk = patches2d.shape
    d = w.shape[1]
    assert rows % row_block == 0
    return pl.pallas_call(
        _patch_embed_kernel,
        out_shape=jax.ShapeDtypeStruct((rows, d), jnp.float32),
        grid=(rows // row_block,),
        in_specs=[
            pl.BlockSpec((row_block, pk), lambda r: (r, 0)),
            pl.BlockSpec((pk, d), lambda r: (0, 0)),
            pl.BlockSpec((1, d), lambda r: (0, 0)),
        ],
        out_specs=pl.BlockSpec((row_block, d), lambda r: (r, 0)),
        compiler_params=pltpu.CompilerParams(
            dimension_semantics=("parallel",)),
    )(patches2d, w, b.reshape(1, d))


# ---------------------------------------------------------------------------
# Kernel 2: the whole transformer stack (all blocks + final LN + CLS pooling)
# in a single pallas_call.
#   grid = (batch_tiles, depth)
#     axis 0 'parallel'  : independent batch tiles (>=2 tiles when B >= 2)
#     axis 1 'arbitrary' : sequential layer loop; f32 activation carried in a
#                          VMEM scratch, bf16 stacked per-layer weights
#                          streamed/double-buffered by BlockSpec.
# ---------------------------------------------------------------------------
def _vit_stack_kernel(x_ref,
                      ln1_g, ln1_b, wqkv, bqkv, wproj, bproj,
                      ln2_g, ln2_b, wfc1, bfc1, wfc2, bfc2,
                      lnf_g, lnf_b,
                      out_ref, act_ref,
                      *, num_heads, n_tokens):
    layer = pl.program_id(1)
    cdt = _COMPUTE_DTYPE

    @pl.when(layer == 0)
    def _():
        act_ref[...] = x_ref[...].astype(jnp.float32)

    x = act_ref[...]                               # (bt, n, d) f32 residual stream
    bt, n, d = x.shape
    hd = d // num_heads
    rows = bt * n
    scale = hd ** -0.5

    # ------------------ attention ------------------
    h = _layernorm(x, ln1_g[0], ln1_b[0])                                 # f32
    qkv = jnp.dot(h.reshape(rows, d).astype(cdt), wqkv[0],
                  preferred_element_type=jnp.float32) + bqkv[0]           # (rows, 3d) f32
    qkv = qkv.astype(cdt)

    # Head split: gather the hd-wide lane chunks of q/k/v into a leading head
    # axis -> single batched matmul over (num_heads*bt) instead of a per-head
    # Python unroll + 6 separately-live score tensors.
    def split_heads(off):
        parts = [qkv[:, off + i * hd: off + (i + 1) * hd].reshape(bt, n, hd)
                 for i in range(num_heads)]
        return jnp.concatenate(parts, axis=0)      # (H*bt, n, hd), head-major

    qh = split_heads(0)
    kh = split_heads(d)
    vh = split_heads(2 * d)

    # Mask padded key tokens (token axis padded to a multiple of 8).
    # Tiny per-layer iota; padded rows are valid queries (wasted) but never
    # contribute as keys, so the CLS output is exact.
    key_valid = jax.lax.broadcasted_iota(jnp.int32, (1, 1, n), 2) < n_tokens

    s = jnp.einsum('bqd,bkd->bqk', qh, kh,
                   preferred_element_type=jnp.float32)                    # (H*bt, n, n) f32
    s = jnp.where(key_valid, s * scale, _NEG_INF)
    s = s - jnp.max(s, axis=-1, keepdims=True)
    p = jnp.exp(s)
    p = p * pl.reciprocal(jnp.sum(p, axis=-1, keepdims=True), approx=True)

    ctx = jnp.einsum('bqk,bkd->bqd', p.astype(cdt), vh,
                     preferred_element_type=jnp.float32)                  # (H*bt, n, hd) f32
    ctx = ctx.astype(cdt)
    # Single lane concat back to head-major 384 lanes, feeding one K=384 GEMM
    # (cheaper on the MXU than 6 K=64 accumulating matmuls; XLU has slack).
    ctx = jnp.concatenate([ctx[i * bt:(i + 1) * bt] for i in range(num_heads)],
                          axis=-1).reshape(rows, d)
    attn = jnp.dot(ctx, wproj[0],
                   preferred_element_type=jnp.float32) + bproj[0]
    x = x + attn.reshape(bt, n, d)

    # ------------------ MLP ------------------
    h2 = _layernorm(x, ln2_g[0], ln2_b[0])
    f1 = jnp.dot(h2.reshape(rows, d).astype(cdt), wfc1[0],
                 preferred_element_type=jnp.float32) + bfc1[0]            # f32
    f1 = _gelu_tanh(f1).astype(cdt)                # bf16 into fc2 bounds the big intermediate
    f2 = jnp.dot(f1, wfc2[0], preferred_element_type=jnp.float32) + bfc2[0]
    x = x + f2.reshape(bt, n, d)

    act_ref[...] = x                               # carry to next layer (VMEM)

    @pl.when(layer == pl.num_programs(1) - 1)
    def _():
        cls_feat = _layernorm(x[:, 0, :], lnf_g[...], lnf_b[...])         # CLS only
        out_ref[...] = cls_feat.reshape(1, bt, d).astype(out_ref.dtype)


def _choose_bt(batch, max_bt=8):
    """Largest divisor of `batch` (<= max_bt) that still gives >=2 batch tiles."""
    divs = [t for t in range(1, min(batch, max_bt) + 1) if batch % t == 0]
    multi = [t for t in divs if batch // t >= 2]
    return max(multi) if multi else max(divs)


def _vmem_limit_bytes():
    # capacity - 8 MiB headroom, capped at 100 MiB:
    #   v7x (64 MiB physical)  -> ~56 MiB
    #   v5e/v6e (128 MiB)      -> 100 MiB
    try:
        cap = int(pltpu.get_tpu_info().vmem_capacity_bytes)
        return max(min(cap - 8 * 1024 * 1024, 100 * 1024 * 1024),
                   32 * 1024 * 1024)
    except Exception:
        return 56 * 1024 * 1024


def vit_forward(x_img, params, *, num_heads, patch=16):
    B = x_img.shape[0]
    D = params['patch_w'].shape[1]
    depth = params['wqkv'].shape[0]
    hidden = params['wfc1'].shape[2]

    # ---- patch extraction + row-tiled embedding GEMM ----
    patches = _extract_patches(x_img, patch=patch)           # (B, Np, C*p*p)
    Np = patches.shape[1]
    rows = B * Np
    p2 = patches.reshape(rows, -1).astype(_COMPUTE_DTYPE)
    rblk = min(512, -(-rows // 8) * 8)                       # row block, x8 aligned
    rows_pad = -(-rows // rblk) * rblk
    if rows_pad != rows:
        p2 = jnp.pad(p2, ((0, rows_pad - rows), (0, 0)))
    emb = patch_embed(p2, params['patch_w'], params['patch_b'],
                      row_block=rblk)[:rows]
    emb = emb.reshape(B, Np, D)

    # ---- CLS token + positional embedding, pad token axis to multiple of 8 ----
    cls = jnp.broadcast_to(params['cls'], (B, 1, D))
    tokens = jnp.concatenate([cls, emb], axis=1) + params['pos']   # (B, 1+Np, D) f32
    n_real = tokens.shape[1]
    n_pad = -(-n_real // 8) * 8
    if n_pad != n_real:
        tokens = jnp.pad(tokens, ((0, 0), (0, n_pad - n_real), (0, 0)))

    bt = _choose_bt(B)
    n_tiles = B // bt
    per_layer = lambda b, l: (l, 0, 0)   # stacked per-layer weight blocks
    shared2d = lambda b, l: (0, 0)       # final-LN params (same every step)

    out3 = pl.pallas_call(
        functools.partial(_vit_stack_kernel, num_heads=num_heads,
                          n_tokens=n_real),
        out_shape=jax.ShapeDtypeStruct((n_tiles, bt, D), jnp.float32),
        grid=(n_tiles, depth),
        in_specs=[
            pl.BlockSpec((bt, n_pad, D), lambda b, l: (b, 0, 0)),   # tokens (f32)
            pl.BlockSpec((1, 1, D), per_layer),            # ln1 gamma      (f32)
            pl.BlockSpec((1, 1, D), per_layer),            # ln1 beta       (f32)
            pl.BlockSpec((1, D, 3 * D), per_layer),        # W_qkv          (bf16)
            pl.BlockSpec((1, 1, 3 * D), per_layer),        # b_qkv          (f32)
            pl.BlockSpec((1, D, D), per_layer),            # W_proj         (bf16)
            pl.BlockSpec((1, 1, D), per_layer),            # b_proj         (f32)
            pl.BlockSpec((1, 1, D), per_layer),            # ln2 gamma      (f32)
            pl.BlockSpec((1, 1, D), per_layer),            # ln2 beta       (f32)
            pl.BlockSpec((1, D, hidden), per_layer),       # W_fc1          (bf16)
            pl.BlockSpec((1, 1, hidden), per_layer),       # b_fc1          (f32)
            pl.BlockSpec((1, hidden, D), per_layer),       # W_fc2          (bf16)
            pl.BlockSpec((1, 1, D), per_layer),            # b_fc2          (f32)
            pl.BlockSpec((1, D), shared2d),                # final LN gamma (f32)
            pl.BlockSpec((1, D), shared2d),                # final LN beta  (f32)
        ],
        out_specs=pl.BlockSpec((1, bt, D), lambda b, l: (b, 0, 0)),
        scratch_shapes=[pltpu.VMEM((bt, n_pad, D), jnp.float32)],
        compiler_params=pltpu.CompilerParams(
            dimension_semantics=("parallel", "arbitrary"),
            vmem_limit_bytes=_vmem_limit_bytes()),
    )(tokens,
      params['ln1_g'], params['ln1_b'], params['wqkv'], params['bqkv'],
      params['wproj'], params['bproj'], params['ln2_g'], params['ln2_b'],
      params['wfc1'], params['bfc1'], params['wfc2'], params['bfc2'],
      params['lnf_g'], params['lnf_b'])
    return out3.reshape(B, D)


# ---------------------------------------------------------------------------
# Deterministic synthetic parameters (timm checkpoint is not loadable here).
# Weight matrices are stored in bf16 (the streamed/MXU dtype); biases, LN
# params, cls and pos stay f32.
# ---------------------------------------------------------------------------
def init_vit_params(key, *, depth, dim, mlp_hidden, patch_dim, n_tokens):
    ks = jax.random.split(key, 18)
    nrm = lambda k, shape, s: s * jax.random.normal(k, shape, jnp.float32)
    bf = lambda a: a.astype(jnp.bfloat16)
    return dict(
        patch_w=bf(nrm(ks[0], (patch_dim, dim), 0.02)),
        patch_b=nrm(ks[1], (dim,), 0.02),
        cls=nrm(ks[2], (1, 1, dim), 0.02),
        pos=nrm(ks[3], (1, n_tokens, dim), 0.02),
        ln1_g=1.0 + nrm(ks[4], (depth, 1, dim), 0.02),
        ln1_b=nrm(ks[5], (depth, 1, dim), 0.02),
        wqkv=bf(nrm(ks[6], (depth, dim, 3 * dim), 0.05)),
        bqkv=nrm(ks[7], (depth, 1, 3 * dim), 0.02),
        wproj=bf(nrm(ks[8], (depth, dim, dim), 0.05)),
        bproj=nrm(ks[9], (depth, 1, dim), 0.02),
        ln2_g=1.0 + nrm(ks[10], (depth, 1, dim), 0.02),
        ln2_b=nrm(ks[11], (depth, 1, dim), 0.02),
        wfc1=bf(nrm(ks[12], (depth, dim, mlp_hidden), 0.05)),
        bfc1=nrm(ks[13], (depth, 1, mlp_hidden), 0.02),
        wfc2=bf(nrm(ks[14], (depth, mlp_hidden, dim), 0.05)),
        bfc2=nrm(ks[15], (depth, 1, dim), 0.02),
        lnf_g=1.0 + nrm(ks[16], (1, dim), 0.02),
        lnf_b=nrm(ks[17], (1, dim), 0.02),
    )


# ---------------------------------------------------------------------------
# Pure-JAX reference.  It mirrors the kernel's mixed precision (bf16 matmul
# inputs, f32 accumulation, f32 LN/softmax/residuals) so it validates kernel
# mechanics tightly; the only intentional deltas are accumulation order and
# the kernel's approximate softmax reciprocal.
# ---------------------------------------------------------------------------
def vit_reference(x_img, params, *, num_heads, patch=16):
    f32, cdt = jnp.float32, _COMPUTE_DTYPE
    mm = lambda a, w: jnp.dot(a.astype(cdt), w.astype(cdt),
                              preferred_element_type=f32)
    B = x_img.shape[0]
    D = params['patch_w'].shape[1]
    depth = params['wqkv'].shape[0]
    hd = D // num_heads
    scale = hd ** -0.5

    patches = _extract_patches(x_img, patch=patch)
    emb = mm(patches, params['patch_w']) + params['patch_b']
    cls = jnp.broadcast_to(params['cls'], (B, 1, D))
    t = jnp.concatenate([cls, emb], axis=1) + params['pos']
    N = t.shape[1]

    for l in range(depth):
        h = _layernorm(t, params['ln1_g'][l], params['ln1_b'][l])
        qkv = mm(h, params['wqkv'][l]) + params['bqkv'][l]
        q, k, v = qkv[..., :D], qkv[..., D:2 * D], qkv[..., 2 * D:]
        split = lambda z: z.reshape(B, N, num_heads, hd).transpose(0, 2, 1, 3)
        q, k, v = split(q), split(k), split(v)
        s = jnp.einsum('bhqd,bhkd->bhqk', q.astype(cdt), k.astype(cdt),
                       preferred_element_type=f32) * scale
        p = jax.nn.softmax(s, axis=-1)
        ctx = jnp.einsum('bhqk,bhkd->bhqd', p.astype(cdt), v.astype(cdt),
                         preferred_element_type=f32)
        ctx = ctx.transpose(0, 2, 1, 3).reshape(B, N, D)
        t = t + mm(ctx, params['wproj'][l]) + params['bproj'][l]
        h = _layernorm(t, params['ln2_g'][l], params['ln2_b'][l])
        g = _gelu_tanh(mm(h, params['wfc1'][l]) + params['bfc1'][l])
        t = t + mm(g, params['wfc2'][l]) + params['bfc2'][l]

    t = _layernorm(t, params['lnf_g'], params['lnf_b'])
    return t[:, 0, :]            # forward_head(pre_logits=True) == CLS features


if __name__ == "__main__":
    # ViT-S channel dims (embed 384, 6 heads, MLP 1536 -> n_outputs=384) at
    # SMALL spatial/depth: 32x32 image -> 4 patches + CLS = 5 tokens (padded
    # to 8), depth=2.  Real ViT-S (224x224, depth=12) only changes grid sizes.
    B, C, IMG, P = 2, 3, 32, 16
    D, HEADS, HIDDEN, DEPTH = 384, 6, 1536, 2
    NP = (IMG // P) ** 2
    N_REAL = NP + 1

    key = jax.random.PRNGKey(0)
    kx, kp = jax.random.split(key)
    x = jax.random.normal(kx, (B, C, IMG, IMG), jnp.float32)
    params = init_vit_params(kp, depth=DEPTH, dim=D, mlp_hidden=HIDDEN,
                             patch_dim=C * P * P, n_tokens=N_REAL)

    out = vit_forward(x, params, num_heads=HEADS, patch=P)
    out = jax.block_until_ready(out)

    ref = vit_reference(x, params, num_heads=HEADS, patch=P)
    assert out.shape == (B, D)
    err = float(jnp.max(jnp.abs(out - ref)))
    # Tolerance covers the approximate softmax reciprocal + accumulation-order
    # differences of the bf16-input / f32-accumulate mixed precision.
    assert jnp.allclose(out, ref, atol=2e-2, rtol=2e-2), err

    print("KERNEL_OK")
</pallas_src>

<mosaic_0001>
module attributes {stable_mosaic.version = 11 : i64} {
  func.func @_patch_embed_kernel(%arg0: i32, %arg1: memref<8x768xbf16, #tpu.memory_space<vmem>>, %arg2: memref<768x384xbf16, #tpu.memory_space<vmem>>, %arg3: memref<1x384xf32, #tpu.memory_space<vmem>>, %arg4: memref<8x384xf32, #tpu.memory_space<vmem>>) attributes {dimension_semantics = [#tpu.dimension_semantics<parallel>], iteration_bounds = array<i64: 1>, scalar_prefetch = 0 : i64, scratch_operands = 0 : i64, tpu.core_type = #tpu.core_type<tc>, window_params = [{transform_indices = @transform_0, window_bounds = array<i64: 8, 768>}, {pipeline_mode = #tpu.pipeline_mode<synchronous>, transform_indices = @transform_1, window_bounds = array<i64: 768, 384>}, {pipeline_mode = #tpu.pipeline_mode<synchronous>, transform_indices = @transform_2, window_bounds = array<i64: 1, 384>}, {transform_indices = @transform_3, window_bounds = array<i64: 8, 384>}]} {
    %c0 = arith.constant 0 : index
    %c0_0 = arith.constant 0 : index
    %0 = vector.load %arg1[%c0, %c0_0] : memref<8x768xbf16, #tpu.memory_space<vmem>>, vector<8x768xbf16>
    %c0_1 = arith.constant 0 : index
    %c0_2 = arith.constant 0 : index
    %1 = vector.load %arg2[%c0_1, %c0_2] : memref<768x384xbf16, #tpu.memory_space<vmem>>, vector<768x384xbf16>
    %cst = arith.constant dense<0.000000e+00> : vector<8x384xf32>
    %2 = tpu.matmul %0, %1, %cst {dimension_numbers = #tpu.dot_dimension_numbers<[1], [0], [0], [1], [0, 0, 1, 1], [], []>} : vector<8x768xbf16>, vector<768x384xbf16>, vector<8x384xf32> -> vector<8x384xf32>
    %c0_3 = arith.constant 0 : index
    %c0_4 = arith.constant 0 : index
    %3 = vector.load %arg3[%c0_3, %c0_4] : memref<1x384xf32, #tpu.memory_space<vmem>>, vector<1x384xf32>
    %4 = vector.broadcast %3 : vector<1x384xf32> to vector<8x384xf32>
    %5 = arith.addf %2, %4 : vector<8x384xf32>
    %c0_5 = arith.constant 0 : index
    %c0_6 = arith.constant 0 : index
    %6 = vector.load %arg4[%c0_5, %c0_6] : memref<8x384xf32, #tpu.memory_space<vmem>>, vector<8x384xf32>
    tpu.vector_store %arg4[%c0_5, %c0_6], %5 {strides = array<i32>} : memref<8x384xf32, #tpu.memory_space<vmem>>, vector<8x384xf32>,
    return
  }
  func.func @transform_0(%arg0: i32) -> (i32, i32) {
    %c0_i32 = arith.constant 0 : i32
    %c0_i32_0 = arith.constant 0 : i32
    return %arg0, %c0_i32 : i32, i32
  }
  func.func @transform_1(%arg0: i32) -> (i32, i32) {
    %c0_i32 = arith.constant 0 : i32
    %c0_i32_0 = arith.constant 0 : i32
    %c0_i32_1 = arith.constant 0 : i32
    return %c0_i32, %c0_i32_0 : i32, i32
  }
  func.func @transform_2(%arg0: i32) -> (i32, i32) {
    %c0_i32 = arith.constant 0 : i32
    %c0_i32_0 = arith.constant 0 : i32
    %c0_i32_1 = arith.constant 0 : i32
    return %c0_i32, %c0_i32_0 : i32, i32
  }
  func.func @transform_3(%arg0: i32) -> (i32, i32) {
    %c0_i32 = arith.constant 0 : i32
    %c0_i32_0 = arith.constant 0 : i32
    return %arg0, %c0_i32 : i32, i32
  }
}

</mosaic_0001>

<llo_original>
// kernel: tpu_custom_call.1
$region0: #{tpu_custom_call.1}
  #allocation0 [shape = 'u32[]', space=smem, size = 0x4, offset = 0x4, fixed_abs, tag = 'smem constant byte address 0x4 - core index']
  #allocation1 [shape = 'u32[144,128]{1,0:T(1,128)}', space=vmem, size = 0x12000, scoped, tag = 'internal scratch']
  %s0 = inlined_call_operand.hbm [shape: bf16[8,768], index: 0, kind: input, shape index: {}]
  %s1 = inlined_call_operand.hbm [shape: bf16[768,384], index: 1, kind: input, shape index: {}]
  %s2 = inlined_call_operand.vmem [shape: f32[1,384], index: 2, kind: input, shape index: {}]
  %s3 = inlined_call_operand.hbm [shape: f32[8,384], index: 3, kind: output, shape index: {}]
  %s4 = sld [smem:[#allocation0]]
  $region30: #{tpu_custom_call.1} parent=0
    _
  %s6 = ssub.s32 1, %s4
  %s7 = scalar_select 0, %s6, %s4
  $region1: #{tpu_custom_call.1} parent=0
    #allocation2 [shape = 'u8[12288]{0}', space=vmem, size = 0x3000, scoped, tag = 'input window, operand 0, single buffered']
    #allocation3 [shape = 's32[1]{0}', space=sflag, size = 0x4, scoped, tag = 'scoped memory for tpu_custom_call.1']
    #allocation4 [shape = 's32[1]{0}', space=sflag, size = 0x4, scoped, tag = 'scoped memory for tpu_custom_call.1']
    #allocation5 [shape = 'u8[589824]{0}', space=vmem, size = 0x90000, scoped, tag = 'input window, operand 1, single buffered']
    #allocation6 [shape = 's32[1]{0}', space=sflag, size = 0x4, scoped, tag = 'scoped memory for tpu_custom_call.1']
    #allocation7 [shape = 'u8[12288]{0}', space=vmem, size = 0x3000, scoped, tag = 'output window, operand 0, single buffered']
    %8 = vsyncpa [#allocation3], 0
    %9 = vsyncpa [#allocation6], 0
    %10 = vsyncpa [#allocation4], 0
    // Predicated region
    $region2: #{tpu_custom_call.1} parent=1 // pred_check
      _
    $region3: #{tpu_custom_call.1} parent=1 // pred_check_branch
      %12 = sbr.rel (0) target = $region5
    $region4: #{tpu_custom_call.1} parent=1 // pred_region
      %s14 = ssub.s32 384, 384
      %15 = vsyncadd [#allocation3], %s14
      %s17 = sshll.u32 [#allocation2], 4
      %s18 = int_to_ptr.vmem [resolvable:$true] %s17
      %20 = dma.hbm_to_vmem [thread:$0]  %s0, 384, %s18, [#allocation3]
    $region5: #{tpu_custom_call.1} parent=1 // pred_fallthru
      _
    // Predicated region
    $region6: #{tpu_custom_call.1} parent=1 // pred_check
      _
    $region7: #{tpu_custom_call.1} parent=1 // pred_check_branch
      %22 = sbr.rel (0) target = $region9
    $region8: #{tpu_custom_call.1} parent=1 // pred_region
      %s24 = ssub.s32 18432, 18432
      %25 = vsyncadd [#allocation6], %s24
      %s26 = sshll.u32 [#allocation5], 4
      %s27 = int_to_ptr.vmem [resolvable:$true] %s26
      %32 = dma.hbm_to_vmem [thread:$0]  %s1, 18432, %s27, [#allocation6], 192, 192, 12
    $region9: #{tpu_custom_call.1} parent=1 // pred_fallthru
      _
    // Predicated region
    $region10: #{tpu_custom_call.1} parent=1 // pred_check
      _
    $region11: #{tpu_custom_call.1} parent=1 // pred_check_branch
      %34 = sbr.rel (0) target = $region13
    $region12: #{tpu_custom_call.1} parent=1 // pred_region
      _
    $region13: #{tpu_custom_call.1} parent=1 // pred_fallthru
      _
    // Predicated region
    $region14: #{tpu_custom_call.1} parent=1 // pred_check
      _
    $region15: #{tpu_custom_call.1} parent=1 // pred_check_branch
      %36 = sbr.rel (0) target = $region17
    $region16: #{tpu_custom_call.1} parent=1 // pred_region
      %37 = dma.done [#allocation3], 384
    $region17: #{tpu_custom_call.1} parent=1 // pred_fallthru
      _
    // Predicated region
    $region18: #{tpu_custom_call.1} parent=1 // pred_check
      _
    $region19: #{tpu_custom_call.1} parent=1 // pred_check_branch
      %39 = sbr.rel (0) target = $region21
    $region20: #{tpu_custom_call.1} parent=1 // pred_region
      %40 = dma.done [#allocation6], 18432
    $region21: #{tpu_custom_call.1} parent=1 // pred_fallthru
      _
    %v42 = vld [vmem:[#allocation2] sm:$0xff]
    %v43 = vld [vmem:[#allocation2 + $0x8] sm:$0xff]
    %v44 = vld [vmem:[#allocation2 + $0x10] sm:$0xff]
    %v45 = vld [vmem:[#allocation5] sm:$0xff]
    %v46 = vld [vmem:[#allocation5 + $0x8] sm:$0xf]
    %v47 = vld [vmem:[#allocation5 + $0xc] sm:$0xff]
    %v48 = vld [vmem:[#allocation5 + $0x14] sm:$0xf]
    %v49 = vld [vmem:[#allocation5 + $0x18] sm:$0xff]
    %v50 = vld [vmem:[#allocation5 + $0x20] sm:$0xf]
    %v51 = vld [vmem:[#allocation5 + $0x24] sm:$0xff]
    %v52 = vld [vmem:[#allocation5 + $0x2c] sm:$0xf]
    %v53 = vld [vmem:[#allocation5 + $0x30] sm:$0xff]
    %v54 = vld [vmem:[#allocation5 + $0x38] sm:$0xf]
    %v55 = vld [vmem:[#allocation5 + $0x3c] sm:$0xff]
    %v56 = vld [vmem:[#allocation5 + $0x44] sm:$0xf]
    %v57 = vld [vmem:[#allocation5 + $0x48] sm:$0xff]
    %v58 = vld [vmem:[#allocation5 + $0x50] sm:$0xf]
    %v59 = vld [vmem:[#allocation5 + $0x54] sm:$0xff]
    %v60 = vld [vmem:[#allocation5 + $0x5c] sm:$0xf]
    %v61 = vld [vmem:[#allocation5 + $0x60] sm:$0xff]
    %v62 = vld [vmem:[#allocation5 + $0x68] sm:$0xf]
    %v63 = vld [vmem:[#allocation5 + $0x6c] sm:$0xff]
    %v64 = vld [vmem:[#allocation5 + $0x74] sm:$0xf]
    %v65 = vld [vmem:[#allocation5 + $0x78] sm:$0xff]
    %v66 = vld [vmem:[#allocation5 + $0x80] sm:$0xf]
    %v67 = vld [vmem:[#allocation5 + $0x84] sm:$0xff]
    %v68 = vld [vmem:[#allocation5 + $0x8c] sm:$0xf]
    %v69 = vld [vmem:[#allocation5 + $0x90] sm:$0xff]
    %v70 = vld [vmem:[#allocation5 + $0x98] sm:$0xf]
    %v71 = vld [vmem:[#allocation5 + $0x9c] sm:$0xff]
    %v72 = vld [vmem:[#allocation5 + $0xa4] sm:$0xf]
    %v73 = vld [vmem:[#allocation5 + $0xa8] sm:$0xff]
    %v74 = vld [vmem:[#allocation5 + $0xb0] sm:$0xf]
    %v75 = vld [vmem:[#allocation5 + $0xb4] sm:$0xff]
    %v76 = vld [vmem:[#allocation5 + $0xbc] sm:$0xf]
    %v77 = vld [vmem:[#allocation5 + $0xc0] sm:$0xff]
    %v78 = vld [vmem:[#allocation5 + $0xc8] sm:$0xf]
    %v79 = vld [vmem:[#allocation5 + $0xcc] sm:$0xff]
    %v80 = vld [vmem:[#allocation5 + $0xd4] sm:$0xf]
    %v81 = vld [vmem:[#allocation5 + $0xd8] sm:$0xff]
    %v82 = vld [vmem:[#allocation5 + $0xe0] sm:$0xf]
    %v83 = vld [vmem:[#allocation5 + $0xe4] sm:$0xff]
    %v84 = vld [vmem:[#allocation5 + $0xec] sm:$0xf]
    %v85 = vld [vmem:[#allocation5 + $0xf0] sm:$0xff]
    %v86 = vld [vmem:[#allocation5 + $0xf8] sm:$0xf]
    %v87 = vld [vmem:[#allocation5 + $0xfc] sm:$0xff]
    %v88 = vld [vmem:[#allocation5 + $0x104] sm:$0xf]
    %v89 = vld [vmem:[#allocation5 + $0x108] sm:$0xff]
    %v90 = vld [vmem:[#allocation5 + $0x110] sm:$0xf]
    %v91 = vld [vmem:[#allocation5 + $0x114] sm:$0xff]
    %v92 = vld [vmem:[#allocation5 + $0x11c] sm:$0xf]
    %v93 = vld [vmem:[#allocation5 + $0x120] sm:$0xff]
    %v94 = vld [vmem:[#allocation5 + $0x128] sm:$0xf]
    %v95 = vld [vmem:[#allocation5 + $0x12c] sm:$0xff]
    %v96 = vld [vmem:[#allocation5 + $0x134] sm:$0xf]
    %v97 = vld [vmem:[#allocation5 + $0x138] sm:$0xff]
    %v98 = vld [vmem:[#allocation5 + $0x140] sm:$0xf]
    %v99 = vld [vmem:[#allocation5 + $0x144] sm:$0xff]
    %v100 = vld [vmem:[#allocation5 + $0x14c] sm:$0xf]
    %v101 = vld [vmem:[#allocation5 + $0x150] sm:$0xff]
    %v102 = vld [vmem:[#allocation5 + $0x158] sm:$0xf]
    %v103 = vld [vmem:[#allocation5 + $0x15c] sm:$0xff]
    %v104 = vld [vmem:[#allocation5 + $0x164] sm:$0xf]
    %v105 = vld [vmem:[#allocation5 + $0x168] sm:$0xff]
    %v106 = vld [vmem:[#allocation5 + $0x170] sm:$0xf]
    %v107 = vld [vmem:[#allocation5 + $0x174] sm:$0xff]
    %v108 = vld [vmem:[#allocation5 + $0x17c] sm:$0xf]
    %v109 = vld [vmem:[#allocation5 + $0x180] sm:$0xff]
    %v110 = vld [vmem:[#allocation5 + $0x188] sm:$0xf]
    %v111 = vld [vmem:[#allocation5 + $0x18c] sm:$0xff]
    %v112 = vld [vmem:[#allocation5 + $0x194] sm:$0xf]
    %v113 = vld [vmem:[#allocation5 + $0x198] sm:$0xff]
    %v114 = vld [vmem:[#allocation5 + $0x1a0] sm:$0xf]
    %v115 = vld [vmem:[#allocation5 + $0x1a4] sm:$0xff]
    %v116 = vld [vmem:[#allocation5 + $0x1ac] sm:$0xf]
    %v117 = vld [vmem:[#allocation5 + $0x1b0] sm:$0xff]
    %v118 = vld [vmem:[#allocation5 + $0x1b8] sm:$0xf]
    %v119 = vld [vmem:[#allocation5 + $0x1bc] sm:$0xff]
    %v120 = vld [vmem:[#allocation5 + $0x1c4] sm:$0xf]
    %v121 = vld [vmem:[#allocation5 + $0x1c8] sm:$0xff]
    %v122 = vld [vmem:[#allocation5 + $0x1d0] sm:$0xf]
    %v123 = vld [vmem:[#allocation5 + $0x1d4] sm:$0xff]
    %v124 = vld [vmem:[#allocation5 + $0x1dc] sm:$0xf]
    %v125 = vld [vmem:[#allocation5 + $0x1e0] sm:$0xff]
    %v126 = vld [vmem:[#allocation5 + $0x1e8] sm:$0xf]
    %v127 = vld [vmem:[#allocation5 + $0x1ec] sm:$0xff]
    %v128 = vld [vmem:[#allocation5 + $0x1f4] sm:$0xf]
    %v129 = vld [vmem:[#allocation5 + $0x1f8] sm:$0xff]
    %v130 = vld [vmem:[#allocation5 + $0x200] sm:$0xf]
    %v131 = vld [vmem:[#allocation5 + $0x204] sm:$0xff]
    %v132 = vld [vmem:[#allocation5 + $0x20c] sm:$0xf]
    %v133 = vld [vmem:[#allocation5 + $0x210] sm:$0xff]
    %v134 = vld [vmem:[#allocation5 + $0x218] sm:$0xf]
    %v135 = vld [vmem:[#allocation5 + $0x21c] sm:$0xff]
    %v136 = vld [vmem:[#allocation5 + $0x224] sm:$0xf]
    %v137 = vld [vmem:[#allocation5 + $0x228] sm:$0xff]
    %v138 = vld [vmem:[#allocation5 + $0x230] sm:$0xf]
    %v139 = vld [vmem:[#allocation5 + $0x234] sm:$0xff]
    %v140 = vld [vmem:[#allocation5 + $0x23c] sm:$0xf]
    %v141 = vld [vmem:[#allocation5 + $0x240] sm:$0xff]
    %v142 = vld [vmem:[#allocation5 + $0x248] sm:$0xf]
    %v143 = vld [vmem:[#allocation5 + $0x24c] sm:$0xff]
    %v144 = vld [vmem:[#allocation5 + $0x254] sm:$0xf]
    %v145 = vld [vmem:[#allocation5 + $0x258] sm:$0xff]
    %v146 = vld [vmem:[#allocation5 + $0x260] sm:$0xf]
    %v147 = vld [vmem:[#allocation5 + $0x264] sm:$0xff]
    %v148 = vld [vmem:[#allocation5 + $0x26c] sm:$0xf]
    %v149 = vld [vmem:[#allocation5 + $0x270] sm:$0xff]
    %v150 = vld [vmem:[#allocation5 + $0x278] sm:$0xf]
    %v151 = vld [vmem:[#allocation5 + $0x27c] sm:$0xff]
    %v152 = vld [vmem:[#allocation5 + $0x284] sm:$0xf]
    %v153 = vld [vmem:[#allocation5 + $0x288] sm:$0xff]
    %v154 = vld [vmem:[#allocation5 + $0x290] sm:$0xf]
    %v155 = vld [vmem:[#allocation5 + $0x294] sm:$0xff]
    %v156 = vld [vmem:[#allocation5 + $0x29c] sm:$0xf]
    %v157 = vld [vmem:[#allocation5 + $0x2a0] sm:$0xff]
    %v158 = vld [vmem:[#allocation5 + $0x2a8] sm:$0xf]
    %v159 = vld [vmem:[#allocation5 + $0x2ac] sm:$0xff]
    %v160 = vld [vmem:[#allocation5 + $0x2b4] sm:$0xf]
    %v161 = vld [vmem:[#allocation5 + $0x2b8] sm:$0xff]
    %v162 = vld [vmem:[#allocation5 + $0x2c0] sm:$0xf]
    %v163 = vld [vmem:[#allocation5 + $0x2c4] sm:$0xff]
    %v164 = vld [vmem:[#allocation5 + $0x2cc] sm:$0xf]
    %v165 = vld [vmem:[#allocation5 + $0x2d0] sm:$0xff]
    %v166 = vld [vmem:[#allocation5 + $0x2d8] sm:$0xf]
    %v167 = vld [vmem:[#allocation5 + $0x2dc] sm:$0xff]
    %v168 = vld [vmem:[#allocation5 + $0x2e4] sm:$0xf]
    %v169 = vld [vmem:[#allocation5 + $0x2e8] sm:$0xff]
    %v170 = vld [vmem:[#allocation5 + $0x2f0] sm:$0xf]
    %v171 = vld [vmem:[#allocation5 + $0x2f4] sm:$0xff]
    %v172 = vld [vmem:[#allocation5 + $0x2fc] sm:$0xf]
    %v173 = vld [vmem:[#allocation5 + $0x300] sm:$0xff]
    %v174 = vld [vmem:[#allocation5 + $0x308] sm:$0xf]
    %v175 = vld [vmem:[#allocation5 + $0x30c] sm:$0xff]
    %v176 = vld [vmem:[#allocation5 + $0x314] sm:$0xf]
    %v177 = vld [vmem:[#allocation5 + $0x318] sm:$0xff]
    %v178 = vld [vmem:[#allocation5 + $0x320] sm:$0xf]
    %v179 = vld [vmem:[#allocation5 + $0x324] sm:$0xff]
    %v180 = vld [vmem:[#allocation5 + $0x32c] sm:$0xf]
    %v181 = vld [vmem:[#allocation5 + $0x330] sm:$0xff]
    %v182 = vld [vmem:[#allocation5 + $0x338] sm:$0xf]
    %v183 = vld [vmem:[#allocation5 + $0x33c] sm:$0xff]
    %v184 = vld [vmem:[#allocation5 + $0x344] sm:$0xf]
    %v185 = vld [vmem:[#allocation5 + $0x348] sm:$0xff]
    %v186 = vld [vmem:[#allocation5 + $0x350] sm:$0xf]
    %v187 = vld [vmem:[#allocation5 + $0x354] sm:$0xff]
    %v188 = vld [vmem:[#allocation5 + $0x35c] sm:$0xf]
    %v189 = vld [vmem:[#allocation5 + $0x360] sm:$0xff]
    %v190 = vld [vmem:[#allocation5 + $0x368] sm:$0xf]
    %v191 = vld [vmem:[#allocation5 + $0x36c] sm:$0xff]
    %v192 = vld [vmem:[#allocation5 + $0x374] sm:$0xf]
    %v193 = vld [vmem:[#allocation5 + $0x378] sm:$0xff]
    %v194 = vld [vmem:[#allocation5 + $0x380] sm:$0xf]
    %v195 = vld [vmem:[#allocation5 + $0x384] sm:$0xff]
    %v196 = vld [vmem:[#allocation5 + $0x38c] sm:$0xf]
    %v197 = vld [vmem:[#allocation5 + $0x390] sm:$0xff]
    %v198 = vld [vmem:[#allocation5 + $0x398] sm:$0xf]
    %v199 = vld [vmem:[#allocation5 + $0x39c] sm:$0xff]
    %v200 = vld [vmem:[#allocation5 + $0x3a4] sm:$0xf]
    %v201 = vld [vmem:[#allocation5 + $0x3a8] sm:$0xff]
    %v202 = vld [vmem:[#allocation5 + $0x3b0] sm:$0xf]
    %v203 = vld [vmem:[#allocation5 + $0x3b4] sm:$0xff]
    %v204 = vld [vmem:[#allocation5 + $0x3bc] sm:$0xf]
    %v205 = vld [vmem:[#allocation5 + $0x3c0] sm:$0xff]
    %v206 = vld [vmem:[#allocation5 + $0x3c8] sm:$0xf]
    %v207 = vld [vmem:[#allocation5 + $0x3cc] sm:$0xff]
    %v208 = vld [vmem:[#allocation5 + $0x3d4] sm:$0xf]
    %v209 = vld [vmem:[#allocation5 + $0x3d8] sm:$0xff]
    %v210 = vld [vmem:[#allocation5 + $0x3e0] sm:$0xf]
    %v211 = vld [vmem:[#allocation5 + $0x3e4] sm:$0xff]
    %v212 = vld [vmem:[#allocation5 + $0x3ec] sm:$0xf]
    %v213 = vld [vmem:[#allocation5 + $0x3f0] sm:$0xff]
    %v214 = vld [vmem:[#allocation5 + $0x3f8] sm:$0xf]
    %v215 = vld [vmem:[#allocation5 + $0x3fc] sm:$0xff]
    %v216 = vld [vmem:[#allocation5 + $0x404] sm:$0xf]
    %v217 = vld [vmem:[#allocation5 + $0x408] sm:$0xff]
    %v218 = vld [vmem:[#allocation5 + $0x410] sm:$0xf]
    %v219 = vld [vmem:[#allocation5 + $0x414] sm:$0xff]
    %v220 = vld [vmem:[#allocation5 + $0x41c] sm:$0xf]
    %v221 = vld [vmem:[#allocation5 + $0x420] sm:$0xff]
    %v222 = vld [vmem:[#allocation5 + $0x428] sm:$0xf]
    %v223 = vld [vmem:[#allocation5 + $0x42c] sm:$0xff]
    %v224 = vld [vmem:[#allocation5 + $0x434] sm:$0xf]
    %v225 = vld [vmem:[#allocation5 + $0x438] sm:$0xff]
    %v226 = vld [vmem:[#allocation5 + $0x440] sm:$0xf]
    %v227 = vld [vmem:[#allocation5 + $0x444] sm:$0xff]
    %v228 = vld [vmem:[#allocation5 + $0x44c] sm:$0xf]
    %v229 = vld [vmem:[#allocation5 + $0x450] sm:$0xff]
    %v230 = vld [vmem:[#allocation5 + $0x458] sm:$0xf]
    %v231 = vld [vmem:[#allocation5 + $0x45c] sm:$0xff]
    %v232 = vld [vmem:[#allocation5 + $0x464] sm:$0xf]
    %v233 = vld [vmem:[#allocation5 + $0x468] sm:$0xff]
    %v234 = vld [vmem:[#allocation5 + $0x470] sm:$0xf]
    %v235 = vld [vmem:[#allocation5 + $0x474] sm:$0xff]
    %v236 = vld [vmem:[#allocation5 + $0x47c] sm:$0xf]
    %v237 = vld [vmem:[%s2] sm:$0x7]
    %v239 = vlaneseq
    %v240 = vshrl.u32 %v239, 7
    %v241 = vsub.s32 0, %v240
    %v242 = vrot.slane %v237, %v241
    %v243 = vlaneseq
    %v244 = vshrl.u32 %v243, 7
    %v245 = vsub.s32 1, %v244
    %v246 = vrot.slane %v237, %v245
    %v247 = vlaneseq
    %v248 = vshrl.u32 %v247, 7
    %v249 = vsub.s32 2, %v248
    %v250 = vrot.slane %v237, %v249
    %v257 = vunpack.c.l.b16 %v42
    %v258 = vunpack.c.h.b16 %v42
    %v259 = vunpack.c.l.b16 %v43
    %v260 = vunpack.c.h.b16 %v43
    %v261 = vunpack.c.l.b16 %v44
    %v262 = vunpack.c.h.b16 %v44
    %v263 = vpack.c.b16 %v257, %v257
    %v264 = vpack.c.b16 %v258, %v258
    %v265 = vpack.c.b16 %v259, %v259
    %v266 = vpack.c.b16 %v260, %v260
    %v267 = vpack.c.b16 %v261, %v261
    %v268 = vpack.c.b16 %v262, %v262
    %v467 = vunpack.c.l.b16 %v45
    %v468 = vunpack.c.h.b16 %v45
    %v469 = vunpack.c.l.b16 %v46
    %v470 = vunpack.c.l.b16 %v47
    %v471 = vunpack.c.h.b16 %v47
    %v472 = vunpack.c.l.b16 %v48
    %v473 = vunpack.c.l.b16 %v49
    %v474 = vunpack.c.h.b16 %v49
    %v475 = vunpack.c.l.b16 %v50
    %v476 = vunpack.c.l.b16 %v51
    %v477 = vunpack.c.h.b16 %v51
    %v478 = vunpack.c.l.b16 %v52
    %v479 = vunpack.c.l.b16 %v53
    %v480 = vunpack.c.h.b16 %v53
    %v481 = vunpack.c.l.b16 %v54
    %v482 = vunpack.c.l.b16 %v55
    %v483 = vunpack.c.h.b16 %v55
    %v484 = vunpack.c.l.b16 %v56
    %v485 = vunpack.c.l.b16 %v57
    %v486 = vunpack.c.h.b16 %v57
    %v487 = vunpack.c.l.b16 %v58
    %v488 = vunpack.c.l.b16 %v59
    %v489 = vunpack.c.h.b16 %v59
    %v490 = vunpack.c.l.b16 %v60
    %v491 = vunpack.c.l.b16 %v61
    %v492 = vunpack.c.h.b16 %v61
    %v493 = vunpack.c.l.b16 %v62
    %v494 = vunpack.c.l.b16 %v63
    %v495 = vunpack.c.h.b16 %v63
    %v496 = vunpack.c.l.b16 %v64
    %v497 = vunpack.c.l.b16 %v65
    %v498 = vunpack.c.h.b16 %v65
    %v499 = vunpack.c.l.b16 %v66
    %v500 = vunpack.c.l.b16 %v67
    %v501 = vunpack.c.h.b16 %v67
    %v502 = vunpack.c.l.b16 %v68
    %v503 = vunpack.c.l.b16 %v69
    %v504 = vunpack.c.h.b16 %v69
    %v505 = vunpack.c.l.b16 %v70
    %v506 = vunpack.c.l.b16 %v71
    %v507 = vunpack.c.h.b16 %v71
    %v508 = vunpack.c.l.b16 %v72
    %v509 = vunpack.c.l.b16 %v73
    %v510 = vunpack.c.h.b16 %v73
    %v511 = vunpack.c.l.b16 %v74
    %v512 = vunpack.c.l.b16 %v75
    %v513 = vunpack.c.h.b16 %v75
    %v514 = vunpack.c.l.b16 %v76
    %v515 = vunpack.c.l.b16 %v77
    %v516 = vunpack.c.h.b16 %v77
    %v517 = vunpack.c.l.b16 %v78
    %v518 = vunpack.c.l.b16 %v79
    %v519 = vunpack.c.h.b16 %v79
    %v520 = vunpack.c.l.b16 %v80
    %v521 = vunpack.c.l.b16 %v81
    %v522 = vunpack.c.h.b16 %v81
    %v523 = vunpack.c.l.b16 %v82
    %v524 = vunpack.c.l.b16 %v83
    %v525 = vunpack.c.h.b16 %v83
    %v526 = vunpack.c.l.b16 %v84
    %v527 = vunpack.c.l.b16 %v85
    %v528 = vunpack.c.h.b16 %v85
    %v529 = vunpack.c.l.b16 %v86
    %v530 = vunpack.c.l.b16 %v87
    %v531 = vunpack.c.h.b16 %v87
    %v532 = vunpack.c.l.b16 %v88
    %v533 = vunpack.c.l.b16 %v89
    %v534 = vunpack.c.h.b16 %v89
    %v535 = vunpack.c.l.b16 %v90
    %v536 = vunpack.c.l.b16 %v91
    %v537 = vunpack.c.h.b16 %v91
    %v538 = vunpack.c.l.b16 %v92
    %v539 = vunpack.c.l.b16 %v93
    %v540 = vunpack.c.h.b16 %v93
    %v541 = vunpack.c.l.b16 %v94
    %v542 = vunpack.c.l.b16 %v95
    %v543 = vunpack.c.h.b16 %v95
    %v544 = vunpack.c.l.b16 %v96
    %v545 = vunpack.c.l.b16 %v97
    %v546 = vunpack.c.h.b16 %v97
    %v547 = vunpack.c.l.b16 %v98
    %v548 = vunpack.c.l.b16 %v99
    %v549 = vunpack.c.h.b16 %v99
    %v550 = vunpack.c.l.b16 %v100
    %v551 = vunpack.c.l.b16 %v101
    %v552 = vunpack.c.h.b16 %v101
    %v553 = vunpack.c.l.b16 %v102
    %v554 = vunpack.c.l.b16 %v103
    %v555 = vunpack.c.h.b16 %v103
    %v556 = vunpack.c.l.b16 %v104
    %v557 = vunpack.c.l.b16 %v105
    %v558 = vunpack.c.h.b16 %v105
    %v559 = vunpack.c.l.b16 %v106
    %v560 = vunpack.c.l.b16 %v107
    %v561 = vunpack.c.h.b16 %v107
    %v562 = vunpack.c.l.b16 %v108
    %v563 = vunpack.c.l.b16 %v109
    %v564 = vunpack.c.h.b16 %v109
    %v565 = vunpack.c.l.b16 %v110
    %v566 = vunpack.c.l.b16 %v111
    %v567 = vunpack.c.h.b16 %v111
    %v568 = vunpack.c.l.b16 %v112
    %v569 = vunpack.c.l.b16 %v113
    %v570 = vunpack.c.h.b16 %v113
    %v571 = vunpack.c.l.b16 %v114
    %v572 = vunpack.c.l.b16 %v115
    %v573 = vunpack.c.h.b16 %v115
    %v574 = vunpack.c.l.b16 %v116
    %v575 = vunpack.c.l.b16 %v117
    %v576 = vunpack.c.h.b16 %v117
    %v577 = vunpack.c.l.b16 %v118
    %v578 = vunpack.c.l.b16 %v119
    %v579 = vunpack.c.h.b16 %v119
    %v580 = vunpack.c.l.b16 %v120
    %v581 = vunpack.c.l.b16 %v121
    %v582 = vunpack.c.h.b16 %v121
    %v583 = vunpack.c.l.b16 %v122
    %v584 = vunpack.c.l.b16 %v123
    %v585 = vunpack.c.h.b16 %v123
    %v586 = vunpack.c.l.b16 %v124
    %v587 = vunpack.c.l.b16 %v125
    %v588 = vunpack.c.h.b16 %v125
    %v589 = vunpack.c.l.b16 %v126
    %v590 = vunpack.c.l.b16 %v127
    %v591 = vunpack.c.h.b16 %v127
    %v592 = vunpack.c.l.b16 %v128
    %v593 = vunpack.c.l.b16 %v129
    %v594 = vunpack.c.h.b16 %v129
    %v595 = vunpack.c.l.b16 %v130
    %v596 = vunpack.c.l.b16 %v131
    %v597 = vunpack.c.h.b16 %v131
    %v598 = vunpack.c.l.b16 %v132
    %v599 = vunpack.c.l.b16 %v133
    %v600 = vunpack.c.h.b16 %v133
    %v601 = vunpack.c.l.b16 %v134
    %v602 = vunpack.c.l.b16 %v135
    %v603 = vunpack.c.h.b16 %v135
    %v604 = vunpack.c.l.b16 %v136
    %v605 = vunpack.c.l.b16 %v137
    %v606 = vunpack.c.h.b16 %v137
    %v607 = vunpack.c.l.b16 %v138
    %v608 = vunpack.c.l.b16 %v139
    %v609 = vunpack.c.h.b16 %v139
    %v610 = vunpack.c.l.b16 %v140
    %v611 = vunpack.c.l.b16 %v141
    %v612 = vunpack.c.h.b16 %v141
    %v613 = vunpack.c.l.b16 %v142
    %v614 = vunpack.c.l.b16 %v143
    %v615 = vunpack.c.h.b16 %v143
    %v616 = vunpack.c.l.b16 %v144
    %v617 = vunpack.c.l.b16 %v145
    %v618 = vunpack.c.h.b16 %v145
    %v619 = vunpack.c.l.b16 %v146
    %v620 = vunpack.c.l.b16 %v147
    %v621 = vunpack.c.h.b16 %v147
    %v622 = vunpack.c.l.b16 %v148
    %v623 = vunpack.c.l.b16 %v149
    %v624 = vunpack.c.h.b16 %v149
    %v625 = vunpack.c.l.b16 %v150
    %v626 = vunpack.c.l.b16 %v151
    %v627 = vunpack.c.h.b16 %v151
    %v628 = vunpack.c.l.b16 %v152
    %v629 = vunpack.c.l.b16 %v153
    %v630 = vunpack.c.h.b16 %v153
    %v631 = vunpack.c.l.b16 %v154
    %v632 = vunpack.c.l.b16 %v155
    %v633 = vunpack.c.h.b16 %v155
    %v634 = vunpack.c.l.b16 %v156
    %v635 = vunpack.c.l.b16 %v157
    %v636 = vunpack.c.h.b16 %v157
    %v637 = vunpack.c.l.b16 %v158
    %v638 = vunpack.c.l.b16 %v159
    %v639 = vunpack.c.h.b16 %v159
    %v640 = vunpack.c.l.b16 %v160
    %v641 = vunpack.c.l.b16 %v161
    %v642 = vunpack.c.h.b16 %v161
    %v643 = vunpack.c.l.b16 %v162
    %v644 = vunpack.c.l.b16 %v163
    %v645 = vunpack.c.h.b16 %v163
    %v646 = vunpack.c.l.b16 %v164
    %v647 = vunpack.c.l.b16 %v165
    %v648 = vunpack.c.h.b16 %v165
    %v649 = vunpack.c.l.b16 %v166
    %v650 = vunpack.c.l.b16 %v167
    %v651 = vunpack.c.h.b16 %v167
    %v652 = vunpack.c.l.b16 %v168
    %v653 = vunpack.c.l.b16 %v169
    %v654 = vunpack.c.h.b16 %v169
    %v655 = vunpack.c.l.b16 %v170
    %v656 = vunpack.c.l.b16 %v171
    %v657 = vunpack.c.h.b16 %v171
    %v658 = vunpack.c.l.b16 %v172
    %v659 = vunpack.c.l.b16 %v173
    %v660 = vunpack.c.h.b16 %v173
    %v661 = vunpack.c.l.b16 %v174
    %v662 = vunpack.c.l.b16 %v175
    %v663 = vunpack.c.h.b16 %v175
    %v664 = vunpack.c.l.b16 %v176
    %v665 = vunpack.c.l.b16 %v177
    %v666 = vunpack.c.h.b16 %v177
    %v667 = vunpack.c.l.b16 %v178
    %v668 = vunpack.c.l.b16 %v179
    %v669 = vunpack.c.h.b16 %v179
    %v670 = vunpack.c.l.b16 %v180
    %v671 = vunpack.c.l.b16 %v181
    %v672 = vunpack.c.h.b16 %v181
    %v673 = vunpack.c.l.b16 %v182
    %v674 = vunpack.c.l.b16 %v183
    %v675 = vunpack.c.h.b16 %v183
    %v676 = vunpack.c.l.b16 %v184
    %v677 = vunpack.c.l.b16 %v185
    %v678 = vunpack.c.h.b16 %v185
    %v679 = vunpack.c.l.b16 %v186
    %v680 = vunpack.c.l.b16 %v187
    %v681 = vunpack.c.h.b16 %v187
    %v682 = vunpack.c.l.b16 %v188
    %v683 = vunpack.c.l.b16 %v189
    %v684 = vunpack.c.h.b16 %v189
    %v685 = vunpack.c.l.b16 %v190
    %v686 = vunpack.c.l.b16 %v191
    %v687 = vunpack.c.h.b16 %v191
    %v688 = vunpack.c.l.b16 %v192
    %v689 = vunpack.c.l.b16 %v193
    %v690 = vunpack.c.h.b16 %v193
    %v691 = vunpack.c.l.b16 %v194
    %v692 = vunpack.c.l.b16 %v195
    %v693 = vunpack.c.h.b16 %v195
    %v694 = vunpack.c.l.b16 %v196
    %v695 = vunpack.c.l.b16 %v197
    %v696 = vunpack.c.h.b16 %v197
    %v697 = vunpack.c.l.b16 %v198
    %v698 = vunpack.c.l.b16 %v199
    %v699 = vunpack.c.h.b16 %v199
    %v700 = vunpack.c.l.b16 %v200
    %v701 = vunpack.c.l.b16 %v201
    %v702 = vunpack.c.h.b16 %v201
    %v703 = vunpack.c.l.b16 %v202
    %v704 = vunpack.c.l.b16 %v203
    %v705 = vunpack.c.h.b16 %v203
    %v706 = vunpack.c.l.b16 %v204
    %v707 = vunpack.c.l.b16 %v205
    %v708 = vunpack.c.h.b16 %v205
    %v709 = vunpack.c.l.b16 %v206
    %v710 = vunpack.c.l.b16 %v207
    %v711 = vunpack.c.h.b16 %v207
    %v712 = vunpack.c.l.b16 %v208
    %v713 = vunpack.c.l.b16 %v209
    %v714 = vunpack.c.h.b16 %v209
    %v715 = vunpack.c.l.b16 %v210
    %v716 = vunpack.c.l.b16 %v211
    %v717 = vunpack.c.h.b16 %v211
    %v718 = vunpack.c.l.b16 %v212
    %v719 = vunpack.c.l.b16 %v213
    %v720 = vunpack.c.h.b16 %v213
    %v721 = vunpack.c.l.b16 %v214
    %v722 = vunpack.c.l.b16 %v215
    %v723 = vunpack.c.h.b16 %v215
    %v724 = vunpack.c.l.b16 %v216
    %v725 = vunpack.c.l.b16 %v217
    %v726 = vunpack.c.h.b16 %v217
    %v727 = vunpack.c.l.b16 %v218
    %v728 = vunpack.c.l.b16 %v219
    %v729 = vunpack.c.h.b16 %v219
    %v730 = vunpack.c.l.b16 %v220
    %v731 = vunpack.c.l.b16 %v221
    %v732 = vunpack.c.h.b16 %v221
    %v733 = vunpack.c.l.b16 %v222
    %v734 = vunpack.c.l.b16 %v223
    %v735 = vunpack.c.h.b16 %v223
    %v736 = vunpack.c.l.b16 %v224
    %v737 = vunpack.c.l.b16 %v225
    %v738 = vunpack.c.h.b16 %v225
    %v739 = vunpack.c.l.b16 %v226
    %v740 = vunpack.c.l.b16 %v227
    %v741 = vunpack.c.h.b16 %v227
    %v742 = vunpack.c.l.b16 %v228
    %v743 = vunpack.c.l.b16 %v229
    %v744 = vunpack.c.h.b16 %v229
    %v745 = vunpack.c.l.b16 %v230
    %v746 = vunpack.c.l.b16 %v231
    %v747 = vunpack.c.h.b16 %v231
    %v748 = vunpack.c.l.b16 %v232
    %v749 = vunpack.c.l.b16 %v233
    %v750 = vunpack.c.h.b16 %v233
    %v751 = vunpack.c.l.b16 %v234
    %v752 = vunpack.c.l.b16 %v235
    %v753 = vunpack.c.h.b16 %v235
    %v754 = vunpack.c.l.b16 %v236
    %v755 = vpack.c.b16 %v470, %v467
    %v756 = vpack.c.b16 %v471, %v468
    %v757 = vpack.c.b16 %v472, %v469
    %v758 = vpack.c.b16 %v476, %v473
    %v759 = vpack.c.b16 %v477, %v474
    %v760 = vpack.c.b16 %v478, %v475
    %v761 = vpack.c.b16 %v482, %v479
    %v762 = vpack.c.b16 %v483, %v480
    %v763 = vpack.c.b16 %v484, %v481
    %v764 = vpack.c.b16 %v488, %v485
    %v765 = vpack.c.b16 %v489, %v486
    %v766 = vpack.c.b16 %v490, %v487
    %v767 = vpack.c.b16 %v494, %v491
    %v768 = vpack.c.b16 %v495, %v492
    %v769 = vpack.c.b16 %v496, %v493
    %v770 = vpack.c.b16 %v500, %v497
    %v771 = vpack.c.b16 %v501, %v498
    %v772 = vpack.c.b16 %v502, %v499
    %v773 = vpack.c.b16 %v506, %v503
    %v774 = vpack.c.b16 %v507, %v504
    %v775 = vpack.c.b16 %v508, %v505
    %v776 = vpack.c.b16 %v512, %v509
    %v777 = vpack.c.b16 %v513, %v510
    %v778 = vpack.c.b16 %v514, %v511
    %v779 = vpack.c.b16 %v518, %v515
    %v780 = vpack.c.b16 %v519, %v516
    %v781 = vpack.c.b16 %v520, %v517
    %v782 = vpack.c.b16 %v524, %v521
    %v783 = vpack.c.b16 %v525, %v522
    %v784 = vpack.c.b16 %v526, %v523
    %v785 = vpack.c.b16 %v530, %v527
    %v786 = vpack.c.b16 %v531, %v528
    %v787 = vpack.c.b16 %v532, %v529
    %v788 = vpack.c.b16 %v536, %v533
    %v789 = vpack.c.b16 %v537, %v534
    %v790 = vpack.c.b16 %v538, %v535
    %v791 = vpack.c.b16 %v542, %v539
    %v792 = vpack.c.b16 %v543, %v540
    %v793 = vpack.c.b16 %v544, %v541
    %v794 = vpack.c.b16 %v548, %v545
    %v795 = vpack.c.b16 %v549, %v546
    %v796 = vpack.c.b16 %v550, %v547
    %v797 = vpack.c.b16 %v554, %v551
    %v798 = vpack.c.b16 %v555, %v552
    %v799 = vpack.c.b16 %v556, %v553
    %v800 = vpack.c.b16 %v560, %v557
    %v801 = vpack.c.b16 %v561, %v558
    %v802 = vpack.c.b16 %v562, %v559
    %v803 = vpack.c.b16 %v566, %v563
    %v804 = vpack.c.b16 %v567, %v564
    %v805 = vpack.c.b16 %v568, %v565
    %v806 = vpack.c.b16 %v572, %v569
    %v807 = vpack.c.b16 %v573, %v570
    %v808 = vpack.c.b16 %v574, %v571
    %v809 = vpack.c.b16 %v578, %v575
    %v810 = vpack.c.b16 %v579, %v576
    %v811 = vpack.c.b16 %v580, %v577
    %v812 = vpack.c.b16 %v584, %v581
    %v813 = vpack.c.b16 %v585, %v582
    %v814 = vpack.c.b16 %v586, %v583
    %v815 = vpack.c.b16 %v590, %v587
    %v816 = vpack.c.b16 %v591, %v588
    %v817 = vpack.c.b16 %v592, %v589
    %v818 = vpack.c.b16 %v596, %v593
    %v819 = vpack.c.b16 %v597, %v594
    %v820 = vpack.c.b16 %v598, %v595
    %v821 = vpack.c.b16 %v602, %v599
    %v822 = vpack.c.b16 %v603, %v600
    %v823 = vpack.c.b16 %v604, %v601
    %v824 = vpack.c.b16 %v608, %v605
    %v825 = vpack.c.b16 %v609, %v606
    %v826 = vpack.c.b16 %v610, %v607
    %v827 = vpack.c.b16 %v614, %v611
    %v828 = vpack.c.b16 %v615, %v612
    %v829 = vpack.c.b16 %v616, %v613
    %v830 = vpack.c.b16 %v620, %v617
    %v831 = vpack.c.b16 %v621, %v618
    %v832 = vpack.c.b16 %v622, %v619
    %v833 = vpack.c.b16 %v626, %v623
    %v834 = vpack.c.b16 %v627, %v624
    %v835 = vpack.c.b16 %v628, %v625
    %v836 = vpack.c.b16 %v632, %v629
    %v837 = vpack.c.b16 %v633, %v630
    %v838 = vpack.c.b16 %v634, %v631
    %v839 = vpack.c.b16 %v638, %v635
    %v840 = vpack.c.b16 %v639, %v636
    %v841 = vpack.c.b16 %v640, %v637
    %v842 = vpack.c.b16 %v644, %v641
    %v843 = vpack.c.b16 %v645, %v642
    %v844 = vpack.c.b16 %v646, %v643
    %v845 = vpack.c.b16 %v650, %v647
    %v846 = vpack.c.b16 %v651, %v648
    %v847 = vpack.c.b16 %v652, %v649
    %v848 = vpack.c.b16 %v656, %v653
    %v849 = vpack.c.b16 %v657, %v654
    %v850 = vpack.c.b16 %v658, %v655
    %v851 = vpack.c.b16 %v662, %v659
    %v852 = vpack.c.b16 %v663, %v660
    %v853 = vpack.c.b16 %v664, %v661
    %v854 = vpack.c.b16 %v668, %v665
    %v855 = vpack.c.b16 %v669, %v666
    %v856 = vpack.c.b16 %v670, %v667
    %v857 = vpack.c.b16 %v674, %v671
    %v858 = vpack.c.b16 %v675, %v672
    %v859 = vpack.c.b16 %v676, %v673
    %v860 = vpack.c.b16 %v680, %v677
    %v861 = vpack.c.b16 %v681, %v678
    %v862 = vpack.c.b16 %v682, %v679
    %v863 = vpack.c.b16 %v686, %v683
    %v864 = vpack.c.b16 %v687, %v684
    %v865 = vpack.c.b16 %v688, %v685
    %v866 = vpack.c.b16 %v692, %v689
    %v867 = vpack.c.b16 %v693, %v690
    %v868 = vpack.c.b16 %v694, %v691
    %v869 = vpack.c.b16 %v698, %v695
    %v870 = vpack.c.b16 %v699, %v696
    %v871 = vpack.c.b16 %v700, %v697
    %v872 = vpack.c.b16 %v704, %v701
    %v873 = vpack.c.b16 %v705, %v702
    %v874 = vpack.c.b16 %v706, %v703
    %v875 = vpack.c.b16 %v710, %v707
    %v876 = vpack.c.b16 %v711, %v708
    %v877 = vpack.c.b16 %v712, %v709
    %v878 = vpack.c.b16 %v716, %v713
    %v879 = vpack.c.b16 %v717, %v714
    %v880 = vpack.c.b16 %v718, %v715
    %v881 = vpack.c.b16 %v722, %v719
    %v882 = vpack.c.b16 %v723, %v720
    %v883 = vpack.c.b16 %v724, %v721
    %v884 = vpack.c.b16 %v728, %v725
    %v885 = vpack.c.b16 %v729, %v726
    %v886 = vpack.c.b16 %v730, %v727
    %v887 = vpack.c.b16 %v734, %v731
    %v888 = vpack.c.b16 %v735, %v732
    %v889 = vpack.c.b16 %v736, %v733
    %v890 = vpack.c.b16 %v740, %v737
    %v891 = vpack.c.b16 %v741, %v738
    %v892 = vpack.c.b16 %v742, %v739
    %v893 = vpack.c.b16 %v746, %v743
    %v894 = vpack.c.b16 %v747, %v744
    %v895 = vpack.c.b16 %v748, %v745
    %v896 = vpack.c.b16 %v752, %v749
    %v897 = vpack.c.b16 %v753, %v750
    %v898 = vpack.c.b16 %v754, %v751
    %1043 = vmatprep.subr.bf16.mxu0 %v756
    %1044 = vmatpush1.bf16.msra.mxu0 %v755
    %1045 = vmatprep.subr.bf16.mxu0 %v759
    %1046 = vmatpush1.bf16.msra.mxu0 %v758
    %1047 = vmatprep.subr.bf16.mxu0 %v762
    %1048 = vmatpush1.bf16.msra.mxu0 %v761
    %1049 = vmatprep.subr.bf16.mxu0 %v765
    %1050 = vmatpush1.bf16.msra.mxu0 %v764
    %1051 = vmatprep.subr.bf16.mxu0 %v768
    %1052 = vmatpush1.bf16.msra.mxu0 %v767
    %1053 = vmatprep.subr.bf16.mxu0 %v771
    %1054 = vmatpush1.bf16.msra.mxu0 %v770
    %1055 = vmatprep.subr.bf16.mxu0 %v774
    %1056 = vmatpush1.bf16.msra.mxu0 %v773
    %1057 = vmatprep.subr.bf16.mxu0 %v777
    %1058 = vmatpush1.bf16.msra.mxu0 %v776
    %1059 = vmatprep.subr.bf16.mxu0 %v780
    %1060 = vmatpush1.bf16.msra.mxu0 %v779
    %1061 = vmatprep.subr.bf16.mxu0 %v783
    %1062 = vmatpush1.bf16.msra.mxu0 %v782
    %1063 = vmatprep.subr.bf16.mxu0 %v786
    %1064 = vmatpush1.bf16.msra.mxu0 %v785
    %1065 = vmatprep.subr.bf16.mxu0 %v789
    %1066 = vmatpush1.bf16.msra.mxu0 %v788
    %1067 = vmatprep.subr.bf16.mxu0 %v792
    %1068 = vmatpush1.bf16.msra.mxu0 %v791
    %1069 = vmatprep.subr.bf16.mxu0 %v795
    %1070 = vmatpush1.bf16.msra.mxu0 %v794
    %1071 = vmatprep.subr.bf16.mxu0 %v798
    %1072 = vmatpush1.bf16.msra.mxu0 %v797
    %1073 = vmatprep.subr.bf16.mxu0 %v801
    %1074 = vmatpush1.bf16.msra.mxu0 %v800
    %1075 = vmatprep.mubr.bf16.mxu0 %v264
    %1076 = vmatmul.mubr.bf16.gmra.mrb[0].mxu0 %v263
    %v1077 = vpop.f32.mrb[0].mxu0
    %v1078 = vadd.f32 %v242, %v1077
    %v1079 = vpop.f32.mrb[0].mxu0
    %v1080 = vadd.f32 %v246, %v1079
    %v1081 = vpop.f32.mrb[0].mxu0
    %v1082 = vpop.f32.mrb[0].mxu0
    %1083 = vdwg.mxu0
    %1084 = vmatprep.subr.bf16.mxu0 %v804
    %1085 = vmatpush1.bf16.msra.mxu0 %v803
    %1086 = vmatprep.subr.bf16.mxu0 %v807
    %1087 = vmatpush1.bf16.msra.mxu0 %v806
    %1088 = vmatprep.subr.bf16.mxu0 %v810
    %1089 = vmatpush1.bf16.msra.mxu0 %v809
    %1090 = vmatprep.subr.bf16.mxu0 %v813
    %1091 = vmatpush1.bf16.msra.mxu0 %v812
    %1092 = vmatprep.subr.bf16.mxu0 %v816
    %1093 = vmatpush1.bf16.msra.mxu0 %v815
    %1094 = vmatprep.subr.bf16.mxu0 %v819
    %1095 = vmatpush1.bf16.msra.mxu0 %v818
    %1096 = vmatprep.subr.bf16.mxu0 %v822
    %1097 = vmatpush1.bf16.msra.mxu0 %v821
    %1098 = vmatprep.subr.bf16.mxu0 %v825
    %1099 = vmatpush1.bf16.msra.mxu0 %v824
    %1100 = vmatprep.subr.bf16.mxu0 %v828
    %1101 = vmatpush1.bf16.msra.mxu0 %v827
    %1102 = vmatprep.subr.bf16.mxu0 %v831
    %1103 = vmatpush1.bf16.msra.mxu0 %v830
    %1104 = vmatprep.subr.bf16.mxu0 %v834
    %1105 = vmatpush1.bf16.msra.mxu0 %v833
    %1106 = vmatprep.subr.bf16.mxu0 %v837
    %1107 = vmatpush1.bf16.msra.mxu0 %v836
    %1108 = vmatprep.subr.bf16.mxu0 %v840
    %1109 = vmatpush1.bf16.msra.mxu0 %v839
    %1110 = vmatprep.subr.bf16.mxu0 %v843
    %1111 = vmatpush1.bf16.msra.mxu0 %v842
    %1112 = vmatprep.subr.bf16.mxu0 %v846
    %1113 = vmatpush1.bf16.msra.mxu0 %v845
    %1114 = vmatprep.subr.bf16.mxu0 %v849
    %1115 = vmatpush1.bf16.msra.mxu0 %v848
    %1116 = vmatprep.mubr.bf16.mxu0 %v266
    %1117 = vmatmul.mubr.bf16.gmra.mrb[0].mxu0 %v265
    %v1118 = vpop.f32.mrb[0].mxu0
    %v1119 = vadd.f32 %v1078, %v1118
    %v1120 = vpop.f32.mrb[0].mxu0
    %v1121 = vadd.f32 %v1080, %v1120
    %v1122 = vpop.f32.mrb[0].mxu0
    %v1123 = vpop.f32.mrb[0].mxu0
    %1124 = vdwg.mxu0
    %1125 = vmatprep.subr.bf16.mxu0 %v852
    %1126 = vmatpush1.bf16.msra.mxu0 %v851
    %1127 = vmatprep.subr.bf16.mxu0 %v855
    %1128 = vmatpush1.bf16.msra.mxu0 %v854
    %1129 = vmatprep.subr.bf16.mxu0 %v858
    %1130 = vmatpush1.bf16.msra.mxu0 %v857
    %1131 = vmatprep.subr.bf16.mxu0 %v861
    %1132 = vmatpush1.bf16.msra.mxu0 %v860
    %1133 = vmatprep.subr.bf16.mxu0 %v864
    %1134 = vmatpush1.bf16.msra.mxu0 %v863
    %1135 = vmatprep.subr.bf16.mxu0 %v867
    %1136 = vmatpush1.bf16.msra.mxu0 %v866
    %1137 = vmatprep.subr.bf16.mxu0 %v870
    %1138 = vmatpush1.bf16.msra.mxu0 %v869
    %1139 = vmatprep.subr.bf16.mxu0 %v873
    %1140 = vmatpush1.bf16.msra.mxu0 %v872
    %1141 = vmatprep.subr.bf16.mxu0 %v876
    %1142 = vmatpush1.bf16.msra.mxu0 %v875
    %1143 = vmatprep.subr.bf16.mxu0 %v879
    %1144 = vmatpush1.bf16.msra.mxu0 %v878
    %1145 = vmatprep.subr.bf16.mxu0 %v882
    %1146 = vmatpush1.bf16.msra.mxu0 %v881
    %1147 = vmatprep.subr.bf16.mxu0 %v885
    %1148 = vmatpush1.bf16.msra.mxu0 %v884
    %1149 = vmatprep.subr.bf16.mxu0 %v888
    %1150 = vmatpush1.bf16.msra.mxu0 %v887
    %1151 = vmatprep.subr.bf16.mxu0 %v891
    %1152 = vmatpush1.bf16.msra.mxu0 %v890
    %1153 = vmatprep.subr.bf16.mxu0 %v894
    %1154 = vmatpush1.bf16.msra.mxu0 %v893
    %1155 = vmatprep.subr.bf16.mxu0 %v897
    %1156 = vmatpush1.bf16.msra.mxu0 %v896
    %1157 = vmatprep.mubr.bf16.mxu0 %v268
    %1158 = vmatmul.mubr.bf16.gmra.mrb[0].mxu0 %v267
    %v1159 = vpop.f32.mrb[0].mxu0
    %v1160 = vadd.f32 %v1119, %v1159
    %v1161 = vpop.f32.mrb[0].mxu0
    %v1162 = vadd.f32 %v1121, %v1161
    %v1163 = vpop.f32.mrb[0].mxu0
    %v1164 = vpop.f32.mrb[0].mxu0
    %1165 = vdwg.mxu0
    %1166 = vmatprep.subr.bf16.mxu0 0
    %1167 = vmatpush1.bf16.msra.mxu0 %v757
    %1168 = vmatprep.subr.bf16.mxu0 0
    %1169 = vmatpush1.bf16.msra.mxu0 %v760
    %1170 = vmatprep.subr.bf16.mxu0 0
    %1171 = vmatpush1.bf16.msra.mxu0 %v763
    %1172 = vmatprep.subr.bf16.mxu0 0
    %1173 = vmatpush1.bf16.msra.mxu0 %v766
    %1174 = vmatprep.subr.bf16.mxu0 0
    %1175 = vmatpush1.bf16.msra.mxu0 %v769
    %1176 = vmatprep.subr.bf16.mxu0 0
    %1177 = vmatpush1.bf16.msra.mxu0 %v772
    %1178 = vmatprep.subr.bf16.mxu0 0
    %1179 = vmatpush1.bf16.msra.mxu0 %v775
    %1180 = vmatprep.subr.bf16.mxu0 0
    %1181 = vmatpush1.bf16.msra.mxu0 %v778
    %1182 = vmatprep.subr.bf16.mxu0 0
    %1183 = vmatpush1.bf16.msra.mxu0 %v781
    %1184 = vmatprep.subr.bf16.mxu0 0
    %1185 = vmatpush1.bf16.msra.mxu0 %v784
    %1186 = vmatprep.subr.bf16.mxu0 0
    %1187 = vmatpush1.bf16.msra.mxu0 %v787
    %1188 = vmatprep.subr.bf16.mxu0 0
    %1189 = vmatpush1.bf16.msra.mxu0 %v790
    %1190 = vmatprep.subr.bf16.mxu0 0
    %1191 = vmatpush1.bf16.msra.mxu0 %v793
    %1192 = vmatprep.subr.bf16.mxu0 0
    %1193 = vmatpush1.bf16.msra.mxu0 %v796
    %1194 = vmatprep.subr.bf16.mxu0 0
    %1195 = vmatpush1.bf16.msra.mxu0 %v799
    %1196 = vmatprep.subr.bf16.mxu0 0
    %1197 = vmatpush1.bf16.msra.mxu0 %v802
    %1198 = vmatprep.mubr.bf16.mxu0 %v264
    %1199 = vmatmul.mubr.bf16.gmra.mrb[0].mxu0 %v263
    %v1200 = vpop.f32.mrb[0].mxu0
    %v1201 = vadd.f32 %v250, %v1200
    %v1202 = vpop.f32.mrb[0].mxu0
    %v1203 = vpop.f32.mrb[0].mxu0
    %v1204 = vpop.f32.mrb[0].mxu0
    %1205 = vdwg.mxu0
    %1206 = vmatprep.subr.bf16.mxu0 0
    %1207 = vmatpush1.bf16.msra.mxu0 %v805
    %1208 = vmatprep.subr.bf16.mxu0 0
    %1209 = vmatpush1.bf16.msra.mxu0 %v808
    %1210 = vmatprep.subr.bf16.mxu0 0
    %1211 = vmatpush1.bf16.msra.mxu0 %v811
    %1212 = vmatprep.subr.bf16.mxu0 0
    %1213 = vmatpush1.bf16.msra.mxu0 %v814
    %1214 = vmatprep.subr.bf16.mxu0 0
    %1215 = vmatpush1.bf16.msra.mxu0 %v817
    %1216 = vmatprep.subr.bf16.mxu0 0
    %1217 = vmatpush1.bf16.msra.mxu0 %v820
    %1218 = vmatprep.subr.bf16.mxu0 0
    %1219 = vmatpush1.bf16.msra.mxu0 %v823
    %1220 = vmatprep.subr.bf16.mxu0 0
    %1221 = vmatpush1.bf16.msra.mxu0 %v826
    %1222 = vmatprep.subr.bf16.mxu0 0
    %1223 = vmatpush1.bf16.msra.mxu0 %v829
    %1224 = vmatprep.subr.bf16.mxu0 0
    %1225 = vmatpush1.bf16.msra.mxu0 %v832
    %1226 = vmatprep.subr.bf16.mxu0 0
    %1227 = vmatpush1.bf16.msra.mxu0 %v835
    %1228 = vmatprep.subr.bf16.mxu0 0
    %1229 = vmatpush1.bf16.msra.mxu0 %v838
    %1230 = vmatprep.subr.bf16.mxu0 0
    %1231 = vmatpush1.bf16.msra.mxu0 %v841
    %1232 = vmatprep.subr.bf16.mxu0 0
    %1233 = vmatpush1.bf16.msra.mxu0 %v844
    %1234 = vmatprep.subr.bf16.mxu0 0
    %1235 = vmatpush1.bf16.msra.mxu0 %v847
    %1236 = vmatprep.subr.bf16.mxu0 0
    %1237 = vmatpush1.bf16.msra.mxu0 %v850
    %1238 = vmatprep.mubr.bf16.mxu0 %v266
    %1239 = vmatmul.mubr.bf16.gmra.mrb[0].mxu0 %v265
    %v1240 = vpop.f32.mrb[0].mxu0
    %v1241 = vadd.f32 %v1201, %v1240
    %v1242 = vpop.f32.mrb[0].mxu0
    %v1243 = vpop.f32.mrb[0].mxu0
    %v1244 = vpop.f32.mrb[0].mxu0
    %1245 = vdwg.mxu0
    %1246 = vmatprep.subr.bf16.mxu0 0
    %1247 = vmatpush1.bf16.msra.mxu0 %v853
    %1248 = vmatprep.subr.bf16.mxu0 0
    %1249 = vmatpush1.bf16.msra.mxu0 %v856
    %1250 = vmatprep.subr.bf16.mxu0 0
    %1251 = vmatpush1.bf16.msra.mxu0 %v859
    %1252 = vmatprep.subr.bf16.mxu0 0
    %1253 = vmatpush1.bf16.msra.mxu0 %v862
    %1254 = vmatprep.subr.bf16.mxu0 0
    %1255 = vmatpush1.bf16.msra.mxu0 %v865
    %1256 = vmatprep.subr.bf16.mxu0 0
    %1257 = vmatpush1.bf16.msra.mxu0 %v868
    %1258 = vmatprep.subr.bf16.mxu0 0
    %1259 = vmatpush1.bf16.msra.mxu0 %v871
    %1260 = vmatprep.subr.bf16.mxu0 0
    %1261 = vmatpush1.bf16.msra.mxu0 %v874
    %1262 = vmatprep.subr.bf16.mxu0 0
    %1263 = vmatpush1.bf16.msra.mxu0 %v877
    %1264 = vmatprep.subr.bf16.mxu0 0
    %1265 = vmatpush1.bf16.msra.mxu0 %v880
    %1266 = vmatprep.subr.bf16.mxu0 0
    %1267 = vmatpush1.bf16.msra.mxu0 %v883
    %1268 = vmatprep.subr.bf16.mxu0 0
    %1269 = vmatpush1.bf16.msra.mxu0 %v886
    %1270 = vmatprep.subr.bf16.mxu0 0
    %1271 = vmatpush1.bf16.msra.mxu0 %v889
    %1272 = vmatprep.subr.bf16.mxu0 0
    %1273 = vmatpush1.bf16.msra.mxu0 %v892
    %1274 = vmatprep.subr.bf16.mxu0 0
    %1275 = vmatpush1.bf16.msra.mxu0 %v895
    %1276 = vmatprep.subr.bf16.mxu0 0
    %1277 = vmatpush1.bf16.msra.mxu0 %v898
    %1278 = vmatprep.mubr.bf16.mxu0 %v268
    %1279 = vmatmul.mubr.bf16.gmra.mrb[0].mxu0 %v267
    %v1280 = vpop.f32.mrb[0].mxu0
    %v1281 = vadd.f32 %v1241, %v1280
    %v1282 = vpop.f32.mrb[0].mxu0
    %v1283 = vpop.f32.mrb[0].mxu0
    %v1284 = vpop.f32.mrb[0].mxu0
    %1285 = vdwg.mxu0
    %1286 = vst [vmem:[#allocation7] sm:$0xff] %v1160
    %1287 = vst [vmem:[#allocation7 + $0x8] sm:$0xff] %v1162
    %1288 = vst [vmem:[#allocation7 + $0x10] sm:$0xff] %v1281
    // Predicated region
    $region22: #{tpu_custom_call.1} parent=1 // pred_check
      _
    $region23: #{tpu_custom_call.1} parent=1 // pred_check_branch
      %1290 = sbr.rel (0) target = $region25
    $region24: #{tpu_custom_call.1} parent=1 // pred_region
      %s1292 = ssub.s32 384, 384
      %1293 = vsyncadd [#allocation4], %s1292
      %s1295 = sshll.u32 [#allocation7], 4
      %s1296 = int_to_ptr.vmem [resolvable:$true] %s1295
      %1298 = dma.vmem_to_hbm [thread:$0]  %s1296, 384, %s3, [#allocation4]
    $region25: #{tpu_custom_call.1} parent=1 // pred_fallthru
      _
    // Predicated region
    $region26: #{tpu_custom_call.1} parent=1 // pred_check
      _
    $region27: #{tpu_custom_call.1} parent=1 // pred_check_branch
      %1300 = sbr.rel (0) target = $region29
    $region28: #{tpu_custom_call.1} parent=1 // pred_region
      %1301 = dma.done [#allocation4], 384
    $region29: #{tpu_custom_call.1} parent=1 // pred_fallthru
      _
    %1302 = vsyncpa [#allocation3], 1
    %1303 = vsyncpa [#allocation6], 1
    %1304 = vsyncpa [#allocation4], 1

</llo_original>
